<compile_context>
chip_gen: v7x
topology: tpu7x:2x2x1
jax: 0.10.0
libtpu: 0.0.40
codegen_flags: <defaults>
</compile_context>

<pallas_src>
import jax
import jax.numpy as jnp
from jax import lax
from jax.experimental import pallas as pl
from jax.experimental.pallas import tpu as pltpu


# ----------------------------- Pallas kernel ------------------------------- #
def lstm_kernel(x_ref, wh_ref, wx_ref, b_ref, wph_ref, bp_ref, p_ref):
    """Full LSTM recurrence, everything vreg/VMEM resident.

    x_ref   : (BP, T)   batch-major inputs (input_dim == 1 folded away)
    wh_ref  : (H, 4H)   [W_gh   | W_ih   | W_fh   | W_oh  ]  (un-transposed)
    wx_ref  : (1, 4H)   [W_gx^T | W_ix^T | W_fx^T | W_ox^T]
    b_ref   : (1, 4H)   [b_g | b_i | b_f | b_o]
    wph_ref : (H, CP)   W_ph^T zero-padded to CP lanes
    bp_ref  : (1, CP)   b_p zero-padded
    p_ref   : (BP, CP)  lane-dense output: p_t of the last timestep
    """
    BP, T = x_ref.shape
    H = wh_ref.shape[0]
    G = 4 * H

    xs = x_ref[...]                                   # (BP, T)
    wh = wh_ref[...]                                  # (H, 4H) loop-invariant
    # Hoisted broadcasts (JAX does not CSE broadcast_in_dim inside the loop).
    wx_b = jnp.broadcast_to(wx_ref[...], (BP, G))     # (BP, 4H)
    b_b = jnp.broadcast_to(b_ref[...], (BP, G))       # (BP, 4H)

    # Lane mask selecting the sigmoid gate (i lives in lanes [H, 2H)).
    lane = lax.broadcasted_iota(jnp.int32, (BP, G), 1)
    is_i = (lane >= H) & (lane < 2 * H)

    h = jnp.zeros((BP, H), jnp.float32)
    c = jnp.zeros((BP, H), jnp.float32)

    # T is a small compile-time constant -> full unroll.
    for t in range(T):
        # x contribution rides as a single broadcast-mul; bias folded in here.
        xb = xs[:, t:t + 1] * wx_b + b_b              # (BP, 4H)
        pre = jnp.dot(h, wh, preferred_element_type=jnp.float32) + xb
        # Two full-vreg transcendentals + one select instead of 4 sliced ones.
        # (f and o intentionally use tanh, matching the reference module.)
        act = jnp.where(is_i, jax.nn.sigmoid(pre), jnp.tanh(pre))
        g = act[:, 0 * H:1 * H]
        i = act[:, 1 * H:2 * H]
        f = act[:, 2 * H:3 * H]
        o = act[:, 3 * H:4 * H]
        c = g * i + c * f
        h = jnp.tanh(c) * o

    # p_t of the final timestep only (matches the PyTorch return value).
    p_ref[...] = (jnp.dot(h, wph_ref[...], preferred_element_type=jnp.float32)
                  + bp_ref[...])


# ------------------------------- Wrapper ------------------------------------ #
def lstm_forward(x, params):
    """x: (batch, seq_len) float32. Returns p_t: (batch, num_classes)."""
    B, T = x.shape
    H = params["W_gh"].shape[0]
    C = params["W_ph"].shape[0]
    assert params["W_gx"].shape[1] == 1, "module forward requires input_dim == 1"

    BP = ((B + 7) // 8) * 8                            # pad batch to sublane group
    CP = ((C + 127) // 128) * 128                      # lane-dense output width

    # Pack gate weights. Input path is used transposed (x_t @ W_*x.T),
    # hidden path is used un-transposed (h @ W_*h), exactly as in the module.
    wx_cat = jnp.concatenate(
        [params["W_gx"].T, params["W_ix"].T, params["W_fx"].T, params["W_ox"].T],
        axis=1).astype(jnp.float32)                    # (1, 4H)
    wh_cat = jnp.concatenate(
        [params["W_gh"], params["W_ih"], params["W_fh"], params["W_oh"]],
        axis=1).astype(jnp.float32)                    # (H, 4H)
    b_cat = jnp.concatenate(
        [params["b_g"], params["b_i"], params["b_f"], params["b_o"]]
    ).reshape(1, 4 * H).astype(jnp.float32)

    wph_pad = jnp.zeros((H, CP), jnp.float32).at[:, :C].set(params["W_ph"].T)
    bp_pad = jnp.zeros((1, CP), jnp.float32).at[:, :C].set(params["b_p"][None, :])

    # Batch-major, sublane-padded x (so x[:, t] is a cheap lane slice).
    x_pad = jnp.zeros((BP, T), jnp.float32).at[:B, :].set(x.astype(jnp.float32))

    vmem = pl.BlockSpec(memory_space=pltpu.MemorySpace.VMEM)
    p_pad = pl.pallas_call(
        lstm_kernel,
        out_shape=jax.ShapeDtypeStruct((BP, CP), jnp.float32),
        in_specs=[vmem] * 6,
        out_specs=vmem,
    )(x_pad, wh_cat, wx_cat, b_cat, wph_pad, bp_pad)

    return p_pad[:B, :C]


# -------------------------- Pure-JAX reference ------------------------------ #
def lstm_ref(x, p):
    B, T = x.shape
    H = p["W_gh"].shape[0]
    h = jnp.zeros((B, H), jnp.float32)
    c = jnp.zeros((B, H), jnp.float32)
    for t in range(T):
        xt = x[:, t][:, None]                          # (B, 1)
        g = jnp.tanh(xt @ p["W_gx"].T + h @ p["W_gh"] + p["b_g"])
        i = jax.nn.sigmoid(xt @ p["W_ix"].T + h @ p["W_ih"] + p["b_i"])
        f = jnp.tanh(xt @ p["W_fx"].T + h @ p["W_fh"] + p["b_f"])
        o = jnp.tanh(xt @ p["W_ox"].T + h @ p["W_oh"] + p["b_o"])
        c = g * i + c * f
        h = jnp.tanh(c) * o
    return h @ p["W_ph"].T + p["b_p"]


# ------------------------------- Main ---------------------------------------- #
def init_params(key, input_dim, num_hidden, num_classes):
    ks = jax.random.split(key, 9)
    n = lambda k, shape: 0.001 * jax.random.normal(k, shape, jnp.float32)
    return {
        "W_gx": n(ks[0], (num_hidden, input_dim)),
        "W_gh": n(ks[1], (num_hidden, num_hidden)),
        "b_g": jnp.zeros((num_hidden,), jnp.float32),
        "W_ix": n(ks[2], (num_hidden, input_dim)),
        "W_ih": n(ks[3], (num_hidden, num_hidden)),
        "b_i": jnp.zeros((num_hidden,), jnp.float32),
        "W_fx": n(ks[4], (num_hidden, input_dim)),
        "W_fh": n(ks[5], (num_hidden, num_hidden)),
        "b_f": jnp.zeros((num_hidden,), jnp.float32),
        "W_ox": n(ks[6], (num_hidden, input_dim)),
        "W_oh": n(ks[7], (num_hidden, num_hidden)),
        "b_o": jnp.zeros((num_hidden,), jnp.float32),
        "W_ph": n(ks[8], (num_classes, num_hidden)),
        "b_p": jnp.zeros((num_classes,), jnp.float32),
    }


if __name__ == "__main__":
    seq_length, input_dim, num_hidden, num_classes = 8, 1, 32, 10
    batch = 2

    key = jax.random.PRNGKey(0)
    k_x, k_p = jax.random.split(key)
    # e.g. a sequence of digits (palindrome-style task the module was built for)
    x = jax.random.randint(k_x, (batch, seq_length), 0, 10).astype(jnp.float32)
    params = init_params(k_p, input_dim, num_hidden, num_classes)

    p_kernel = jax.block_until_ready(lstm_forward(x, params))
    p_ref = jax.block_until_ready(lstm_ref(x, params))

    assert p_kernel.shape == (batch, num_classes)
    assert jnp.allclose(p_kernel, p_ref, rtol=1e-5, atol=1e-5), (
        f"mismatch: max abs err {jnp.max(jnp.abs(p_kernel - p_ref))}")

    print("KERNEL_OK")
</pallas_src>

<mosaic_0001>
module attributes {stable_mosaic.version = 11 : i64} {
  func.func @lstm_kernel(%arg0: memref<8x8xf32, #tpu.memory_space<vmem>>, %arg1: memref<32x128xf32, #tpu.memory_space<vmem>>, %arg2: memref<1x128xf32, #tpu.memory_space<vmem>>, %arg3: memref<1x128xf32, #tpu.memory_space<vmem>>, %arg4: memref<32x128xf32, #tpu.memory_space<vmem>>, %arg5: memref<1x128xf32, #tpu.memory_space<vmem>>, %arg6: memref<8x128xf32, #tpu.memory_space<vmem>>) attributes {dimension_semantics = [], scalar_prefetch = 0 : i64, scratch_operands = 0 : i64, tpu.core_type = #tpu.core_type<tc>} {
    %c0 = arith.constant 0 : index
    %c0_0 = arith.constant 0 : index
    %0 = vector.load %arg0[%c0, %c0_0] : memref<8x8xf32, #tpu.memory_space<vmem>>, vector<8x8xf32>
    %c0_1 = arith.constant 0 : index
    %c0_2 = arith.constant 0 : index
    %1 = vector.load %arg1[%c0_1, %c0_2] : memref<32x128xf32, #tpu.memory_space<vmem>>, vector<32x128xf32>
    %c0_3 = arith.constant 0 : index
    %c0_4 = arith.constant 0 : index
    %2 = vector.load %arg2[%c0_3, %c0_4] : memref<1x128xf32, #tpu.memory_space<vmem>>, vector<1x128xf32>
    %3 = vector.shape_cast %2 : vector<1x128xf32> to vector<1x128xf32>
    %4 = vector.broadcast %3 : vector<1x128xf32> to vector<8x128xf32>
    %c0_5 = arith.constant 0 : index
    %c0_6 = arith.constant 0 : index
    %5 = vector.load %arg3[%c0_5, %c0_6] : memref<1x128xf32, #tpu.memory_space<vmem>>, vector<1x128xf32>
    %6 = vector.shape_cast %5 : vector<1x128xf32> to vector<1x128xf32>
    %7 = vector.broadcast %6 : vector<1x128xf32> to vector<8x128xf32>
    %8 = tpu.iota {dimensions = array<i32: 1>} : vector<8x128xi32>
    %c32_i32 = arith.constant 32 : i32
    %9 = vector.broadcast %c32_i32 : i32 to vector<8x128xi32>
    %10 = arith.cmpi sge, %8, %9 : vector<8x128xi32>
    %c64_i32 = arith.constant 64 : i32
    %11 = vector.broadcast %c64_i32 : i32 to vector<8x128xi32>
    %12 = arith.cmpi slt, %8, %11 : vector<8x128xi32>
    %13 = arith.andi %10, %12 : vector<8x128xi1>
    %cst = arith.constant 0.000000e+00 : f32
    %14 = vector.broadcast %cst : f32 to vector<8x32xf32>
    %cst_7 = arith.constant 0.000000e+00 : f32
    %15 = vector.broadcast %cst_7 : f32 to vector<8x32xf32>
    %16 = vector.extract_strided_slice %0 {offsets = [0, 0], sizes = [8, 1], strides = [1, 1]} : vector<8x8xf32> to vector<8x1xf32>
    %17 = vector.broadcast %16 : vector<8x1xf32> to vector<8x128xf32>
    %18 = arith.mulf %17, %4 : vector<8x128xf32>
    %19 = arith.addf %18, %7 : vector<8x128xf32>
    %cst_8 = arith.constant dense<0.000000e+00> : vector<8x128xf32>
    %20 = tpu.matmul %14, %1, %cst_8 {dimension_numbers = #tpu.dot_dimension_numbers<[1], [0], [0], [1], [0, 0, 1, 1], [], []>} : vector<8x32xf32>, vector<32x128xf32>, vector<8x128xf32> -> vector<8x128xf32>
    %21 = arith.addf %20, %19 : vector<8x128xf32>
    %22 = arith.negf %21 : vector<8x128xf32>
    %23 = math.exp %22 : vector<8x128xf32>
    %cst_9 = arith.constant 1.000000e+00 : f32
    %24 = vector.broadcast %cst_9 : f32 to vector<8x128xf32>
    %25 = arith.addf %24, %23 : vector<8x128xf32>
    %26 = arith.divf %24, %25 : vector<8x128xf32>
    %27 = math.tanh %21 : vector<8x128xf32>
    %28 = arith.select %13, %26, %27 : vector<8x128xi1>, vector<8x128xf32>
    %29 = vector.extract_strided_slice %28 {offsets = [0, 0], sizes = [8, 32], strides = [1, 1]} : vector<8x128xf32> to vector<8x32xf32>
    %30 = vector.extract_strided_slice %28 {offsets = [0, 32], sizes = [8, 32], strides = [1, 1]} : vector<8x128xf32> to vector<8x32xf32>
    %31 = vector.extract_strided_slice %28 {offsets = [0, 64], sizes = [8, 32], strides = [1, 1]} : vector<8x128xf32> to vector<8x32xf32>
    %32 = vector.extract_strided_slice %28 {offsets = [0, 96], sizes = [8, 32], strides = [1, 1]} : vector<8x128xf32> to vector<8x32xf32>
    %33 = arith.mulf %29, %30 : vector<8x32xf32>
    %34 = arith.mulf %15, %31 : vector<8x32xf32>
    %35 = arith.addf %33, %34 : vector<8x32xf32>
    %36 = math.tanh %35 : vector<8x32xf32>
    %37 = arith.mulf %36, %32 : vector<8x32xf32>
    %38 = vector.extract_strided_slice %0 {offsets = [0, 1], sizes = [8, 1], strides = [1, 1]} : vector<8x8xf32> to vector<8x1xf32>
    %39 = vector.broadcast %38 : vector<8x1xf32> to vector<8x128xf32>
    %40 = arith.mulf %39, %4 : vector<8x128xf32>
    %41 = arith.addf %40, %7 : vector<8x128xf32>
    %cst_10 = arith.constant dense<0.000000e+00> : vector<8x128xf32>
    %42 = tpu.matmul %37, %1, %cst_10 {dimension_numbers = #tpu.dot_dimension_numbers<[1], [0], [0], [1], [0, 0, 1, 1], [], []>} : vector<8x32xf32>, vector<32x128xf32>, vector<8x128xf32> -> vector<8x128xf32>
    %43 = arith.addf %42, %41 : vector<8x128xf32>
    %44 = arith.negf %43 : vector<8x128xf32>
    %45 = math.exp %44 : vector<8x128xf32>
    %cst_11 = arith.constant 1.000000e+00 : f32
    %46 = vector.broadcast %cst_11 : f32 to vector<8x128xf32>
    %47 = arith.addf %46, %45 : vector<8x128xf32>
    %48 = arith.divf %46, %47 : vector<8x128xf32>
    %49 = math.tanh %43 : vector<8x128xf32>
    %50 = arith.select %13, %48, %49 : vector<8x128xi1>, vector<8x128xf32>
    %51 = vector.extract_strided_slice %50 {offsets = [0, 0], sizes = [8, 32], strides = [1, 1]} : vector<8x128xf32> to vector<8x32xf32>
    %52 = vector.extract_strided_slice %50 {offsets = [0, 32], sizes = [8, 32], strides = [1, 1]} : vector<8x128xf32> to vector<8x32xf32>
    %53 = vector.extract_strided_slice %50 {offsets = [0, 64], sizes = [8, 32], strides = [1, 1]} : vector<8x128xf32> to vector<8x32xf32>
    %54 = vector.extract_strided_slice %50 {offsets = [0, 96], sizes = [8, 32], strides = [1, 1]} : vector<8x128xf32> to vector<8x32xf32>
    %55 = arith.mulf %51, %52 : vector<8x32xf32>
    %56 = arith.mulf %35, %53 : vector<8x32xf32>
    %57 = arith.addf %55, %56 : vector<8x32xf32>
    %58 = math.tanh %57 : vector<8x32xf32>
    %59 = arith.mulf %58, %54 : vector<8x32xf32>
    %60 = vector.extract_strided_slice %0 {offsets = [0, 2], sizes = [8, 1], strides = [1, 1]} : vector<8x8xf32> to vector<8x1xf32>
    %61 = vector.broadcast %60 : vector<8x1xf32> to vector<8x128xf32>
    %62 = arith.mulf %61, %4 : vector<8x128xf32>
    %63 = arith.addf %62, %7 : vector<8x128xf32>
    %cst_12 = arith.constant dense<0.000000e+00> : vector<8x128xf32>
    %64 = tpu.matmul %59, %1, %cst_12 {dimension_numbers = #tpu.dot_dimension_numbers<[1], [0], [0], [1], [0, 0, 1, 1], [], []>} : vector<8x32xf32>, vector<32x128xf32>, vector<8x128xf32> -> vector<8x128xf32>
    %65 = arith.addf %64, %63 : vector<8x128xf32>
    %66 = arith.negf %65 : vector<8x128xf32>
    %67 = math.exp %66 : vector<8x128xf32>
    %cst_13 = arith.constant 1.000000e+00 : f32
    %68 = vector.broadcast %cst_13 : f32 to vector<8x128xf32>
    %69 = arith.addf %68, %67 : vector<8x128xf32>
    %70 = arith.divf %68, %69 : vector<8x128xf32>
    %71 = math.tanh %65 : vector<8x128xf32>
    %72 = arith.select %13, %70, %71 : vector<8x128xi1>, vector<8x128xf32>
    %73 = vector.extract_strided_slice %72 {offsets = [0, 0], sizes = [8, 32], strides = [1, 1]} : vector<8x128xf32> to vector<8x32xf32>
    %74 = vector.extract_strided_slice %72 {offsets = [0, 32], sizes = [8, 32], strides = [1, 1]} : vector<8x128xf32> to vector<8x32xf32>
    %75 = vector.extract_strided_slice %72 {offsets = [0, 64], sizes = [8, 32], strides = [1, 1]} : vector<8x128xf32> to vector<8x32xf32>
    %76 = vector.extract_strided_slice %72 {offsets = [0, 96], sizes = [8, 32], strides = [1, 1]} : vector<8x128xf32> to vector<8x32xf32>
    %77 = arith.mulf %73, %74 : vector<8x32xf32>
    %78 = arith.mulf %57, %75 : vector<8x32xf32>
    %79 = arith.addf %77, %78 : vector<8x32xf32>
    %80 = math.tanh %79 : vector<8x32xf32>
    %81 = arith.mulf %80, %76 : vector<8x32xf32>
    %82 = vector.extract_strided_slice %0 {offsets = [0, 3], sizes = [8, 1], strides = [1, 1]} : vector<8x8xf32> to vector<8x1xf32>
    %83 = vector.broadcast %82 : vector<8x1xf32> to vector<8x128xf32>
    %84 = arith.mulf %83, %4 : vector<8x128xf32>
    %85 = arith.addf %84, %7 : vector<8x128xf32>
    %cst_14 = arith.constant dense<0.000000e+00> : vector<8x128xf32>
    %86 = tpu.matmul %81, %1, %cst_14 {dimension_numbers = #tpu.dot_dimension_numbers<[1], [0], [0], [1], [0, 0, 1, 1], [], []>} : vector<8x32xf32>, vector<32x128xf32>, vector<8x128xf32> -> vector<8x128xf32>
    %87 = arith.addf %86, %85 : vector<8x128xf32>
    %88 = arith.negf %87 : vector<8x128xf32>
    %89 = math.exp %88 : vector<8x128xf32>
    %cst_15 = arith.constant 1.000000e+00 : f32
    %90 = vector.broadcast %cst_15 : f32 to vector<8x128xf32>
    %91 = arith.addf %90, %89 : vector<8x128xf32>
    %92 = arith.divf %90, %91 : vector<8x128xf32>
    %93 = math.tanh %87 : vector<8x128xf32>
    %94 = arith.select %13, %92, %93 : vector<8x128xi1>, vector<8x128xf32>
    %95 = vector.extract_strided_slice %94 {offsets = [0, 0], sizes = [8, 32], strides = [1, 1]} : vector<8x128xf32> to vector<8x32xf32>
    %96 = vector.extract_strided_slice %94 {offsets = [0, 32], sizes = [8, 32], strides = [1, 1]} : vector<8x128xf32> to vector<8x32xf32>
    %97 = vector.extract_strided_slice %94 {offsets = [0, 64], sizes = [8, 32], strides = [1, 1]} : vector<8x128xf32> to vector<8x32xf32>
    %98 = vector.extract_strided_slice %94 {offsets = [0, 96], sizes = [8, 32], strides = [1, 1]} : vector<8x128xf32> to vector<8x32xf32>
    %99 = arith.mulf %95, %96 : vector<8x32xf32>
    %100 = arith.mulf %79, %97 : vector<8x32xf32>
    %101 = arith.addf %99, %100 : vector<8x32xf32>
    %102 = math.tanh %101 : vector<8x32xf32>
    %103 = arith.mulf %102, %98 : vector<8x32xf32>
    %104 = vector.extract_strided_slice %0 {offsets = [0, 4], sizes = [8, 1], strides = [1, 1]} : vector<8x8xf32> to vector<8x1xf32>
    %105 = vector.broadcast %104 : vector<8x1xf32> to vector<8x128xf32>
    %106 = arith.mulf %105, %4 : vector<8x128xf32>
    %107 = arith.addf %106, %7 : vector<8x128xf32>
    %cst_16 = arith.constant dense<0.000000e+00> : vector<8x128xf32>
    %108 = tpu.matmul %103, %1, %cst_16 {dimension_numbers = #tpu.dot_dimension_numbers<[1], [0], [0], [1], [0, 0, 1, 1], [], []>} : vector<8x32xf32>, vector<32x128xf32>, vector<8x128xf32> -> vector<8x128xf32>
    %109 = arith.addf %108, %107 : vector<8x128xf32>
    %110 = arith.negf %109 : vector<8x128xf32>
    %111 = math.exp %110 : vector<8x128xf32>
    %cst_17 = arith.constant 1.000000e+00 : f32
    %112 = vector.broadcast %cst_17 : f32 to vector<8x128xf32>
    %113 = arith.addf %112, %111 : vector<8x128xf32>
    %114 = arith.divf %112, %113 : vector<8x128xf32>
    %115 = math.tanh %109 : vector<8x128xf32>
    %116 = arith.select %13, %114, %115 : vector<8x128xi1>, vector<8x128xf32>
    %117 = vector.extract_strided_slice %116 {offsets = [0, 0], sizes = [8, 32], strides = [1, 1]} : vector<8x128xf32> to vector<8x32xf32>
    %118 = vector.extract_strided_slice %116 {offsets = [0, 32], sizes = [8, 32], strides = [1, 1]} : vector<8x128xf32> to vector<8x32xf32>
    %119 = vector.extract_strided_slice %116 {offsets = [0, 64], sizes = [8, 32], strides = [1, 1]} : vector<8x128xf32> to vector<8x32xf32>
    %120 = vector.extract_strided_slice %116 {offsets = [0, 96], sizes = [8, 32], strides = [1, 1]} : vector<8x128xf32> to vector<8x32xf32>
    %121 = arith.mulf %117, %118 : vector<8x32xf32>
    %122 = arith.mulf %101, %119 : vector<8x32xf32>
    %123 = arith.addf %121, %122 : vector<8x32xf32>
    %124 = math.tanh %123 : vector<8x32xf32>
    %125 = arith.mulf %124, %120 : vector<8x32xf32>
    %126 = vector.extract_strided_slice %0 {offsets = [0, 5], sizes = [8, 1], strides = [1, 1]} : vector<8x8xf32> to vector<8x1xf32>
    %127 = vector.broadcast %126 : vector<8x1xf32> to vector<8x128xf32>
    %128 = arith.mulf %127, %4 : vector<8x128xf32>
    %129 = arith.addf %128, %7 : vector<8x128xf32>
    %cst_18 = arith.constant dense<0.000000e+00> : vector<8x128xf32>
    %130 = tpu.matmul %125, %1, %cst_18 {dimension_numbers = #tpu.dot_dimension_numbers<[1], [0], [0], [1], [0, 0, 1, 1], [], []>} : vector<8x32xf32>, vector<32x128xf32>, vector<8x128xf32> -> vector<8x128xf32>
    %131 = arith.addf %130, %129 : vector<8x128xf32>
    %132 = arith.negf %131 : vector<8x128xf32>
    %133 = math.exp %132 : vector<8x128xf32>
    %cst_19 = arith.constant 1.000000e+00 : f32
    %134 = vector.broadcast %cst_19 : f32 to vector<8x128xf32>
    %135 = arith.addf %134, %133 : vector<8x128xf32>
    %136 = arith.divf %134, %135 : vector<8x128xf32>
    %137 = math.tanh %131 : vector<8x128xf32>
    %138 = arith.select %13, %136, %137 : vector<8x128xi1>, vector<8x128xf32>
    %139 = vector.extract_strided_slice %138 {offsets = [0, 0], sizes = [8, 32], strides = [1, 1]} : vector<8x128xf32> to vector<8x32xf32>
    %140 = vector.extract_strided_slice %138 {offsets = [0, 32], sizes = [8, 32], strides = [1, 1]} : vector<8x128xf32> to vector<8x32xf32>
    %141 = vector.extract_strided_slice %138 {offsets = [0, 64], sizes = [8, 32], strides = [1, 1]} : vector<8x128xf32> to vector<8x32xf32>
    %142 = vector.extract_strided_slice %138 {offsets = [0, 96], sizes = [8, 32], strides = [1, 1]} : vector<8x128xf32> to vector<8x32xf32>
    %143 = arith.mulf %139, %140 : vector<8x32xf32>
    %144 = arith.mulf %123, %141 : vector<8x32xf32>
    %145 = arith.addf %143, %144 : vector<8x32xf32>
    %146 = math.tanh %145 : vector<8x32xf32>
    %147 = arith.mulf %146, %142 : vector<8x32xf32>
    %148 = vector.extract_strided_slice %0 {offsets = [0, 6], sizes = [8, 1], strides = [1, 1]} : vector<8x8xf32> to vector<8x1xf32>
    %149 = vector.broadcast %148 : vector<8x1xf32> to vector<8x128xf32>
    %150 = arith.mulf %149, %4 : vector<8x128xf32>
    %151 = arith.addf %150, %7 : vector<8x128xf32>
    %cst_20 = arith.constant dense<0.000000e+00> : vector<8x128xf32>
    %152 = tpu.matmul %147, %1, %cst_20 {dimension_numbers = #tpu.dot_dimension_numbers<[1], [0], [0], [1], [0, 0, 1, 1], [], []>} : vector<8x32xf32>, vector<32x128xf32>, vector<8x128xf32> -> vector<8x128xf32>
    %153 = arith.addf %152, %151 : vector<8x128xf32>
    %154 = arith.negf %153 : vector<8x128xf32>
    %155 = math.exp %154 : vector<8x128xf32>
    %cst_21 = arith.constant 1.000000e+00 : f32
    %156 = vector.broadcast %cst_21 : f32 to vector<8x128xf32>
    %157 = arith.addf %156, %155 : vector<8x128xf32>
    %158 = arith.divf %156, %157 : vector<8x128xf32>
    %159 = math.tanh %153 : vector<8x128xf32>
    %160 = arith.select %13, %158, %159 : vector<8x128xi1>, vector<8x128xf32>
    %161 = vector.extract_strided_slice %160 {offsets = [0, 0], sizes = [8, 32], strides = [1, 1]} : vector<8x128xf32> to vector<8x32xf32>
    %162 = vector.extract_strided_slice %160 {offsets = [0, 32], sizes = [8, 32], strides = [1, 1]} : vector<8x128xf32> to vector<8x32xf32>
    %163 = vector.extract_strided_slice %160 {offsets = [0, 64], sizes = [8, 32], strides = [1, 1]} : vector<8x128xf32> to vector<8x32xf32>
    %164 = vector.extract_strided_slice %160 {offsets = [0, 96], sizes = [8, 32], strides = [1, 1]} : vector<8x128xf32> to vector<8x32xf32>
    %165 = arith.mulf %161, %162 : vector<8x32xf32>
    %166 = arith.mulf %145, %163 : vector<8x32xf32>
    %167 = arith.addf %165, %166 : vector<8x32xf32>
    %168 = math.tanh %167 : vector<8x32xf32>
    %169 = arith.mulf %168, %164 : vector<8x32xf32>
    %170 = vector.extract_strided_slice %0 {offsets = [0, 7], sizes = [8, 1], strides = [1, 1]} : vector<8x8xf32> to vector<8x1xf32>
    %171 = vector.broadcast %170 : vector<8x1xf32> to vector<8x128xf32>
    %172 = arith.mulf %171, %4 : vector<8x128xf32>
    %173 = arith.addf %172, %7 : vector<8x128xf32>
    %cst_22 = arith.constant dense<0.000000e+00> : vector<8x128xf32>
    %174 = tpu.matmul %169, %1, %cst_22 {dimension_numbers = #tpu.dot_dimension_numbers<[1], [0], [0], [1], [0, 0, 1, 1], [], []>} : vector<8x32xf32>, vector<32x128xf32>, vector<8x128xf32> -> vector<8x128xf32>
    %175 = arith.addf %174, %173 : vector<8x128xf32>
    %176 = arith.negf %175 : vector<8x128xf32>
    %177 = math.exp %176 : vector<8x128xf32>
    %cst_23 = arith.constant 1.000000e+00 : f32
    %178 = vector.broadcast %cst_23 : f32 to vector<8x128xf32>
    %179 = arith.addf %178, %177 : vector<8x128xf32>
    %180 = arith.divf %178, %179 : vector<8x128xf32>
    %181 = math.tanh %175 : vector<8x128xf32>
    %182 = arith.select %13, %180, %181 : vector<8x128xi1>, vector<8x128xf32>
    %183 = vector.extract_strided_slice %182 {offsets = [0, 0], sizes = [8, 32], strides = [1, 1]} : vector<8x128xf32> to vector<8x32xf32>
    %184 = vector.extract_strided_slice %182 {offsets = [0, 32], sizes = [8, 32], strides = [1, 1]} : vector<8x128xf32> to vector<8x32xf32>
    %185 = vector.extract_strided_slice %182 {offsets = [0, 64], sizes = [8, 32], strides = [1, 1]} : vector<8x128xf32> to vector<8x32xf32>
    %186 = vector.extract_strided_slice %182 {offsets = [0, 96], sizes = [8, 32], strides = [1, 1]} : vector<8x128xf32> to vector<8x32xf32>
    %187 = arith.mulf %183, %184 : vector<8x32xf32>
    %188 = arith.mulf %167, %185 : vector<8x32xf32>
    %189 = arith.addf %187, %188 : vector<8x32xf32>
    %190 = math.tanh %189 : vector<8x32xf32>
    %191 = arith.mulf %190, %186 : vector<8x32xf32>
    %c0_24 = arith.constant 0 : index
    %c0_25 = arith.constant 0 : index
    %192 = vector.load %arg4[%c0_24, %c0_25] : memref<32x128xf32, #tpu.memory_space<vmem>>, vector<32x128xf32>
    %cst_26 = arith.constant dense<0.000000e+00> : vector<8x128xf32>
    %193 = tpu.matmul %191, %192, %cst_26 {dimension_numbers = #tpu.dot_dimension_numbers<[1], [0], [0], [1], [0, 0, 1, 1], [], []>} : vector<8x32xf32>, vector<32x128xf32>, vector<8x128xf32> -> vector<8x128xf32>
    %c0_27 = arith.constant 0 : index
    %c0_28 = arith.constant 0 : index
    %194 = vector.load %arg5[%c0_27, %c0_28] : memref<1x128xf32, #tpu.memory_space<vmem>>, vector<1x128xf32>
    %195 = vector.broadcast %194 : vector<1x128xf32> to vector<8x128xf32>
    %196 = arith.addf %193, %195 : vector<8x128xf32>
    %c0_29 = arith.constant 0 : index
    %c0_30 = arith.constant 0 : index
    %197 = vector.load %arg6[%c0_29, %c0_30] : memref<8x128xf32, #tpu.memory_space<vmem>>, vector<8x128xf32>
    tpu.vector_store %arg6[%c0_29, %c0_30], %196 {strides = array<i32>} : memref<8x128xf32, #tpu.memory_space<vmem>>, vector<8x128xf32>,
    return
  }
}

</mosaic_0001>

<llo_original>
// kernel: tpu_custom_call.1
$region0: #{tpu_custom_call.1}
  #allocation0 [shape = 'u32[]', space=smem, size = 0x4, offset = 0x4, fixed_abs, tag = 'smem constant byte address 0x4 - core index']
  #allocation1 [shape = 'u32[144,128]{1,0:T(1,128)}', space=vmem, size = 0x12000, scoped, tag = 'internal scratch']
  %s0 = inlined_call_operand.hbm [shape: f32[8,8], index: 0, kind: input, shape index: {}]
  %s1 = inlined_call_operand.hbm [shape: f32[32,128], index: 1, kind: input, shape index: {}]
  %s2 = inlined_call_operand.vmem [shape: f32[1,128], index: 2, kind: input, shape index: {}]
  %s3 = inlined_call_operand.vmem [shape: f32[1,128], index: 3, kind: input, shape index: {}]
  %s4 = inlined_call_operand.hbm [shape: f32[32,128], index: 4, kind: input, shape index: {}]
  %s5 = inlined_call_operand.vmem [shape: f32[1,128], index: 5, kind: input, shape index: {}]
  %s6 = inlined_call_operand.hbm [shape: f32[8,128], index: 6, kind: output, shape index: {}]
  %s7 = sld [smem:[#allocation0]]
  $region46: #{tpu_custom_call.1} parent=0
    _
  %s9 = ssub.s32 1, %s7
  %s10 = scalar_select 0, %s9, %s7
  $region1: #{tpu_custom_call.1} parent=0
    #allocation2 [shape = 'u8[4096]{0}', space=vmem, size = 0x1000, scoped, tag = 'input window, operand 0, single buffered']
    #allocation3 [shape = 's32[1]{0}', space=sflag, size = 0x4, scoped, tag = 'scoped memory for tpu_custom_call.1']
    #allocation4 [shape = 's32[1]{0}', space=sflag, size = 0x4, scoped, tag = 'scoped memory for tpu_custom_call.1']
    #allocation5 [shape = 'u8[16384]{0}', space=vmem, size = 0x4000, scoped, tag = 'input window, operand 1, single buffered']
    #allocation6 [shape = 's32[1]{0}', space=sflag, size = 0x4, scoped, tag = 'scoped memory for tpu_custom_call.1']
    #allocation7 [shape = 'u8[16384]{0}', space=vmem, size = 0x4000, scoped, tag = 'input window, operand 4, single buffered']
    #allocation8 [shape = 'u8[4096]{0}', space=vmem, size = 0x1000, scoped, tag = 'output window, operand 0, single buffered']
    %11 = vsyncpa [#allocation3], 0
    %12 = vsyncpa [#allocation6], 0
    %13 = vsyncpa [#allocation4], 0
    // Predicated region
    $region2: #{tpu_custom_call.1} parent=1 // pred_check
      _
    $region3: #{tpu_custom_call.1} parent=1 // pred_check_branch
      %15 = sbr.rel (0) target = $region5
    $region4: #{tpu_custom_call.1} parent=1 // pred_region
      %s17 = ssub.s32 128, 128
      %18 = vsyncadd [#allocation3], %s17
      %s20 = sshll.u32 [#allocation2], 4
      %s21 = int_to_ptr.vmem [resolvable:$true] %s20
      %23 = dma.hbm_to_vmem [thread:$0]  %s0, 128, %s21, [#allocation3]
    $region5: #{tpu_custom_call.1} parent=1 // pred_fallthru
      _
    // Predicated region
    $region6: #{tpu_custom_call.1} parent=1 // pred_check
      _
    $region7: #{tpu_custom_call.1} parent=1 // pred_check_branch
      %25 = sbr.rel (0) target = $region9
    $region8: #{tpu_custom_call.1} parent=1 // pred_region
      %s27 = ssub.s32 512, 512
      %28 = vsyncadd [#allocation6], %s27
      %s29 = sshll.u32 [#allocation5], 4
      %s30 = int_to_ptr.vmem [resolvable:$true] %s29
      %35 = dma.hbm_to_vmem [thread:$0]  %s1, 512, %s30, [#allocation6], 128, 128, 8
    $region9: #{tpu_custom_call.1} parent=1 // pred_fallthru
      _
    // Predicated region
    $region10: #{tpu_custom_call.1} parent=1 // pred_check
      _
    $region11: #{tpu_custom_call.1} parent=1 // pred_check_branch
      %37 = sbr.rel (0) target = $region13
    $region12: #{tpu_custom_call.1} parent=1 // pred_region
      _
    $region13: #{tpu_custom_call.1} parent=1 // pred_fallthru
      _
    // Predicated region
    $region14: #{tpu_custom_call.1} parent=1 // pred_check
      _
    $region15: #{tpu_custom_call.1} parent=1 // pred_check_branch
      %39 = sbr.rel (0) target = $region17
    $region16: #{tpu_custom_call.1} parent=1 // pred_region
      _
    $region17: #{tpu_custom_call.1} parent=1 // pred_fallthru
      _
    // Predicated region
    $region18: #{tpu_custom_call.1} parent=1 // pred_check
      _
    $region19: #{tpu_custom_call.1} parent=1 // pred_check_branch
      %41 = sbr.rel (0) target = $region21
    $region20: #{tpu_custom_call.1} parent=1 // pred_region
      %s43 = ssub.s32 512, 512
      %44 = vsyncadd [#allocation6], %s43
      %s45 = sshll.u32 [#allocation7], 4
      %s46 = int_to_ptr.vmem [resolvable:$true] %s45
      %51 = dma.hbm_to_vmem [thread:$0]  %s4, 512, %s46, [#allocation6], 128, 128, 8
    $region21: #{tpu_custom_call.1} parent=1 // pred_fallthru
      _
    // Predicated region
    $region22: #{tpu_custom_call.1} parent=1 // pred_check
      _
    $region23: #{tpu_custom_call.1} parent=1 // pred_check_branch
      %53 = sbr.rel (0) target = $region25
    $region24: #{tpu_custom_call.1} parent=1 // pred_region
      _
    $region25: #{tpu_custom_call.1} parent=1 // pred_fallthru
      _
    // Predicated region
    $region26: #{tpu_custom_call.1} parent=1 // pred_check
      _
    $region27: #{tpu_custom_call.1} parent=1 // pred_check_branch
      %55 = sbr.rel (0) target = $region29
    $region28: #{tpu_custom_call.1} parent=1 // pred_region
      %56 = dma.done [#allocation3], 128
    $region29: #{tpu_custom_call.1} parent=1 // pred_fallthru
      _
    // Predicated region
    $region30: #{tpu_custom_call.1} parent=1 // pred_check
      _
    $region31: #{tpu_custom_call.1} parent=1 // pred_check_branch
      %58 = sbr.rel (0) target = $region33
    $region32: #{tpu_custom_call.1} parent=1 // pred_region
      %59 = dma.done [#allocation6], 512
    $region33: #{tpu_custom_call.1} parent=1 // pred_fallthru
      _
    // Predicated region
    $region34: #{tpu_custom_call.1} parent=1 // pred_check
      _
    $region35: #{tpu_custom_call.1} parent=1 // pred_check_branch
      %61 = sbr.rel (0) target = $region37
    $region36: #{tpu_custom_call.1} parent=1 // pred_region
      %62 = dma.done [#allocation6], 512
    $region37: #{tpu_custom_call.1} parent=1 // pred_fallthru
      _
    %v63 = vld [vmem:[#allocation2] sm:$0xff]
    %v64 = vld [vmem:[#allocation5] sm:$0xff]
    %v65 = vld [vmem:[#allocation5 + $0x8] sm:$0xff]
    %v66 = vld [vmem:[#allocation5 + $0x10] sm:$0xff]
    %v67 = vld [vmem:[#allocation5 + $0x18] sm:$0xff]
    %v68 = vld [vmem:[%s2] sm:$0x1]
    %v70 = vlaneseq
    %v71 = vshrl.u32 %v70, 7
    %v72 = vsub.s32 0, %v71
    %v73 = vrot.slane %v68, %v72
    %v75 = vld [vmem:[%s3] sm:$0x1]
    %v77 = vlaneseq
    %v78 = vshrl.u32 %v77, 7
    %v79 = vsub.s32 0, %v78
    %v80 = vrot.slane %v75, %v79
    %v82 = vlaneseq
    %v83 = vand.u32 %v82, 127
    %vm84 = vcmp.ge.s32.totalorder %v83, 32
    %vm85 = vcmp.lt.s32.totalorder %v83, 64
    %vm86 = vmand %vm84, %vm85
    %88 = vset.pattern.permute.xlu0 0
    %89 = vperm.xlu0 %88, %v63
    %v90 = vpop.permute.xlu0 %89
    %v92 = vmul.f32 %v90, %v73
    %v93 = vadd.f32 %v92, %v80
    %vm94 = vcmask 261120
    %v96 = vsel %vm94, 0.0, 0
    %98 = vmatprep.subr.mxu0 0.0
    %99 = vmatpush1.msra.mxu0 %v64
    %100 = vmatprep.subr.mxu0 0.0
    %101 = vmatpush1.msra.mxu0 %v65
    %102 = vmatprep.subr.mxu0 0.0
    %103 = vmatpush1.msra.mxu0 %v66
    %104 = vmatprep.subr.mxu0 0.0
    %105 = vmatpush1.msra.mxu0 %v67
    %106 = vmatprep.subr.mxu0 0.0
    %107 = vmatpush1.msra.mxu0 0.0
    %108 = vmatprep.subr.mxu0 0.0
    %109 = vmatpush1.msra.mxu0 0.0
    %110 = vmatprep.subr.mxu0 0.0
    %111 = vmatpush1.msra.mxu0 0.0
    %112 = vmatprep.subr.mxu0 0.0
    %113 = vmatpush1.msra.mxu0 0.0
    %114 = vmatprep.subr.mxu0 0.0
    %115 = vmatpush1.msra.mxu0 0.0
    %116 = vmatprep.subr.mxu0 0.0
    %117 = vmatpush1.msra.mxu0 0.0
    %118 = vmatprep.subr.mxu0 0.0
    %119 = vmatpush1.msra.mxu0 0.0
    %120 = vmatprep.subr.mxu0 0.0
    %121 = vmatpush1.msra.mxu0 0.0
    %122 = vmatprep.subr.mxu0 0.0
    %123 = vmatpush1.msra.mxu0 0.0
    %124 = vmatprep.subr.mxu0 0.0
    %125 = vmatpush1.msra.mxu0 0.0
    %126 = vmatprep.subr.mxu0 0.0
    %127 = vmatpush1.msra.mxu0 0.0
    %128 = vmatprep.subr.mxu0 0.0
    %129 = vmatpush1.msra.mxu0 0.0
    %130 = vmatprep.subr.mxu0 0.0
    %131 = vmatpush1.msra.mxu0 0.0
    %132 = vmatprep.subr.mxu0 0.0
    %133 = vmatpush1.msra.mxu0 0.0
    %134 = vmatprep.subr.mxu0 0.0
    %135 = vmatpush1.msra.mxu0 0.0
    %136 = vmatprep.subr.mxu0 0.0
    %137 = vmatpush1.msra.mxu0 0.0
    %138 = vmatprep.subr.mxu0 0.0
    %139 = vmatpush1.msra.mxu0 0.0
    %140 = vmatprep.subr.mxu0 0.0
    %141 = vmatpush1.msra.mxu0 0.0
    %142 = vmatprep.subr.mxu0 0.0
    %143 = vmatpush1.msra.mxu0 0.0
    %144 = vmatprep.subr.mxu0 0.0
    %145 = vmatpush1.msra.mxu0 0.0
    %146 = vmatprep.subr.mxu0 0.0
    %147 = vmatpush1.msra.mxu0 0.0
    %148 = vmatprep.subr.mxu0 0.0
    %149 = vmatpush1.msra.mxu0 0.0
    %150 = vmatprep.subr.mxu0 0.0
    %151 = vmatpush1.msra.mxu0 0.0
    %152 = vmatprep.subr.mxu0 0.0
    %153 = vmatpush1.msra.mxu0 0.0
    %154 = vmatprep.subr.mxu0 0.0
    %155 = vmatpush1.msra.mxu0 0.0
    %156 = vmatprep.subr.mxu0 0.0
    %157 = vmatpush1.msra.mxu0 0.0
    %158 = vmatprep.subr.mxu0 0.0
    %159 = vmatpush1.msra.mxu0 0.0
    %160 = vmatprep.subr.mxu0 0.0
    %161 = vmatpush1.msra.mxu0 0.0
    %162 = vmatprep.mubr.f32.mxu0 0.0
    %163 = vmatmul.mubr.f32.gmra.mrb[0].mxu0 %v96
    %v164 = vpop.f32.mrb[0].mxu0
    %v165 = vadd.f32 %v93, %v164
    %v166 = vpop.f32.mrb[0].mxu0
    %167 = vdwg.mxu0
    %v168 = vxor.u32 %v165, 2147483648
    %v169 = vmul.f32 %v168, 1.442695
    %v170 = vpow.pop %v169
    %v171 = vadd.f32 %v170, 1.0
    %v172 = vrcp.pop %v171
    %v173 = vmul.f32 1.0, %v172
    %v174 = vtanh.pop %v165
    %v175 = vsel %vm86, %v173, %v174
    %177 = vrot.lane.b32.xlu0 %v175, 96
    %v178 = vpop.permute.xlu0 %177
    %v180 = vmul.f32 %v175, %v178
    %v181 = vmul.f32 %v175, 0.0
    %183 = vrot.lane.b32.xlu0 %v181, 64
    %v184 = vpop.permute.xlu0 %183
    %v186 = vadd.f32 %v180, %v184
    %v187 = vtanh.pop %v186
    %188 = vrot.lane.b32.xlu0 %v175, 32
    %v189 = vpop.permute.xlu0 %188
    %v191 = vmul.f32 %v187, %v189
    %192 = vset.pattern.permute.xlu0 1
    %193 = vperm.xlu0 %192, %v63
    %v194 = vpop.permute.xlu0 %193
    %v196 = vmul.f32 %v194, %v73
    %v197 = vadd.f32 %v196, %v80
    %v199 = vsel %vm94, %v191, 0
    %201 = vmatprep.subr.mxu0 0.0
    %202 = vmatpush1.msra.mxu0 %v64
    %203 = vmatprep.subr.mxu0 0.0
    %204 = vmatpush1.msra.mxu0 %v65
    %205 = vmatprep.subr.mxu0 0.0
    %206 = vmatpush1.msra.mxu0 %v66
    %207 = vmatprep.subr.mxu0 0.0
    %208 = vmatpush1.msra.mxu0 %v67
    %209 = vmatprep.subr.mxu0 0.0
    %210 = vmatpush1.msra.mxu0 0.0
    %211 = vmatprep.subr.mxu0 0.0
    %212 = vmatpush1.msra.mxu0 0.0
    %213 = vmatprep.subr.mxu0 0.0
    %214 = vmatpush1.msra.mxu0 0.0
    %215 = vmatprep.subr.mxu0 0.0
    %216 = vmatpush1.msra.mxu0 0.0
    %217 = vmatprep.subr.mxu0 0.0
    %218 = vmatpush1.msra.mxu0 0.0
    %219 = vmatprep.subr.mxu0 0.0
    %220 = vmatpush1.msra.mxu0 0.0
    %221 = vmatprep.subr.mxu0 0.0
    %222 = vmatpush1.msra.mxu0 0.0
    %223 = vmatprep.subr.mxu0 0.0
    %224 = vmatpush1.msra.mxu0 0.0
    %225 = vmatprep.subr.mxu0 0.0
    %226 = vmatpush1.msra.mxu0 0.0
    %227 = vmatprep.subr.mxu0 0.0
    %228 = vmatpush1.msra.mxu0 0.0
    %229 = vmatprep.subr.mxu0 0.0
    %230 = vmatpush1.msra.mxu0 0.0
    %231 = vmatprep.subr.mxu0 0.0
    %232 = vmatpush1.msra.mxu0 0.0
    %233 = vmatprep.subr.mxu0 0.0
    %234 = vmatpush1.msra.mxu0 0.0
    %235 = vmatprep.subr.mxu0 0.0
    %236 = vmatpush1.msra.mxu0 0.0
    %237 = vmatprep.subr.mxu0 0.0
    %238 = vmatpush1.msra.mxu0 0.0
    %239 = vmatprep.subr.mxu0 0.0
    %240 = vmatpush1.msra.mxu0 0.0
    %241 = vmatprep.subr.mxu0 0.0
    %242 = vmatpush1.msra.mxu0 0.0
    %243 = vmatprep.subr.mxu0 0.0
    %244 = vmatpush1.msra.mxu0 0.0
    %245 = vmatprep.subr.mxu0 0.0
    %246 = vmatpush1.msra.mxu0 0.0
    %247 = vmatprep.subr.mxu0 0.0
    %248 = vmatpush1.msra.mxu0 0.0
    %249 = vmatprep.subr.mxu0 0.0
    %250 = vmatpush1.msra.mxu0 0.0
    %251 = vmatprep.subr.mxu0 0.0
    %252 = vmatpush1.msra.mxu0 0.0
    %253 = vmatprep.subr.mxu0 0.0
    %254 = vmatpush1.msra.mxu0 0.0
    %255 = vmatprep.subr.mxu0 0.0
    %256 = vmatpush1.msra.mxu0 0.0
    %257 = vmatprep.subr.mxu0 0.0
    %258 = vmatpush1.msra.mxu0 0.0
    %259 = vmatprep.subr.mxu0 0.0
    %260 = vmatpush1.msra.mxu0 0.0
    %261 = vmatprep.subr.mxu0 0.0
    %262 = vmatpush1.msra.mxu0 0.0
    %263 = vmatprep.subr.mxu0 0.0
    %264 = vmatpush1.msra.mxu0 0.0
    %265 = vmatprep.mubr.f32.mxu0 0.0
    %266 = vmatmul.mubr.f32.gmra.mrb[0].mxu0 %v199
    %v267 = vpop.f32.mrb[0].mxu0
    %v268 = vadd.f32 %v197, %v267
    %v269 = vpop.f32.mrb[0].mxu0
    %270 = vdwg.mxu0
    %v271 = vxor.u32 %v268, 2147483648
    %v272 = vmul.f32 %v271, 1.442695
    %v273 = vpow.pop %v272
    %v274 = vadd.f32 %v273, 1.0
    %v275 = vrcp.pop %v274
    %v276 = vmul.f32 1.0, %v275
    %v277 = vtanh.pop %v268
    %v278 = vsel %vm86, %v276, %v277
    %280 = vrot.lane.b32.xlu0 %v278, 96
    %v281 = vpop.permute.xlu0 %280
    %v283 = vmul.f32 %v278, %v281
    %284 = vrot.lane.b32.xlu0 %v278, 64
    %v285 = vpop.permute.xlu0 %284
    %v287 = vmul.f32 %v186, %v285
    %v288 = vadd.f32 %v283, %v287
    %v289 = vtanh.pop %v288
    %290 = vrot.lane.b32.xlu0 %v278, 32
    %v291 = vpop.permute.xlu0 %290
    %v293 = vmul.f32 %v289, %v291
    %294 = vset.pattern.permute.xlu0 2
    %295 = vperm.xlu0 %294, %v63
    %v296 = vpop.permute.xlu0 %295
    %v298 = vmul.f32 %v296, %v73
    %v299 = vadd.f32 %v298, %v80
    %v301 = vsel %vm94, %v293, 0
    %303 = vmatprep.subr.mxu0 0.0
    %304 = vmatpush1.msra.mxu0 %v64
    %305 = vmatprep.subr.mxu0 0.0
    %306 = vmatpush1.msra.mxu0 %v65
    %307 = vmatprep.subr.mxu0 0.0
    %308 = vmatpush1.msra.mxu0 %v66
    %309 = vmatprep.subr.mxu0 0.0
    %310 = vmatpush1.msra.mxu0 %v67
    %311 = vmatprep.subr.mxu0 0.0
    %312 = vmatpush1.msra.mxu0 0.0
    %313 = vmatprep.subr.mxu0 0.0
    %314 = vmatpush1.msra.mxu0 0.0
    %315 = vmatprep.subr.mxu0 0.0
    %316 = vmatpush1.msra.mxu0 0.0
    %317 = vmatprep.subr.mxu0 0.0
    %318 = vmatpush1.msra.mxu0 0.0
    %319 = vmatprep.subr.mxu0 0.0
    %320 = vmatpush1.msra.mxu0 0.0
    %321 = vmatprep.subr.mxu0 0.0
    %322 = vmatpush1.msra.mxu0 0.0
    %323 = vmatprep.subr.mxu0 0.0
    %324 = vmatpush1.msra.mxu0 0.0
    %325 = vmatprep.subr.mxu0 0.0
    %326 = vmatpush1.msra.mxu0 0.0
    %327 = vmatprep.subr.mxu0 0.0
    %328 = vmatpush1.msra.mxu0 0.0
    %329 = vmatprep.subr.mxu0 0.0
    %330 = vmatpush1.msra.mxu0 0.0
    %331 = vmatprep.subr.mxu0 0.0
    %332 = vmatpush1.msra.mxu0 0.0
    %333 = vmatprep.subr.mxu0 0.0
    %334 = vmatpush1.msra.mxu0 0.0
    %335 = vmatprep.subr.mxu0 0.0
    %336 = vmatpush1.msra.mxu0 0.0
    %337 = vmatprep.subr.mxu0 0.0
    %338 = vmatpush1.msra.mxu0 0.0
    %339 = vmatprep.subr.mxu0 0.0
    %340 = vmatpush1.msra.mxu0 0.0
    %341 = vmatprep.subr.mxu0 0.0
    %342 = vmatpush1.msra.mxu0 0.0
    %343 = vmatprep.subr.mxu0 0.0
    %344 = vmatpush1.msra.mxu0 0.0
    %345 = vmatprep.subr.mxu0 0.0
    %346 = vmatpush1.msra.mxu0 0.0
    %347 = vmatprep.subr.mxu0 0.0
    %348 = vmatpush1.msra.mxu0 0.0
    %349 = vmatprep.subr.mxu0 0.0
    %350 = vmatpush1.msra.mxu0 0.0
    %351 = vmatprep.subr.mxu0 0.0
    %352 = vmatpush1.msra.mxu0 0.0
    %353 = vmatprep.subr.mxu0 0.0
    %354 = vmatpush1.msra.mxu0 0.0
    %355 = vmatprep.subr.mxu0 0.0
    %356 = vmatpush1.msra.mxu0 0.0
    %357 = vmatprep.subr.mxu0 0.0
    %358 = vmatpush1.msra.mxu0 0.0
    %359 = vmatprep.subr.mxu0 0.0
    %360 = vmatpush1.msra.mxu0 0.0
    %361 = vmatprep.subr.mxu0 0.0
    %362 = vmatpush1.msra.mxu0 0.0
    %363 = vmatprep.subr.mxu0 0.0
    %364 = vmatpush1.msra.mxu0 0.0
    %365 = vmatprep.subr.mxu0 0.0
    %366 = vmatpush1.msra.mxu0 0.0
    %367 = vmatprep.mubr.f32.mxu0 0.0
    %368 = vmatmul.mubr.f32.gmra.mrb[0].mxu0 %v301
    %v369 = vpop.f32.mrb[0].mxu0
    %v370 = vadd.f32 %v299, %v369
    %v371 = vpop.f32.mrb[0].mxu0
    %372 = vdwg.mxu0
    %v373 = vxor.u32 %v370, 2147483648
    %v374 = vmul.f32 %v373, 1.442695
    %v375 = vpow.pop %v374
    %v376 = vadd.f32 %v375, 1.0
    %v377 = vrcp.pop %v376
    %v378 = vmul.f32 1.0, %v377
    %v379 = vtanh.pop %v370
    %v380 = vsel %vm86, %v378, %v379
    %382 = vrot.lane.b32.xlu0 %v380, 96
    %v383 = vpop.permute.xlu0 %382
    %v385 = vmul.f32 %v380, %v383
    %386 = vrot.lane.b32.xlu0 %v380, 64
    %v387 = vpop.permute.xlu0 %386
    %v389 = vmul.f32 %v288, %v387
    %v390 = vadd.f32 %v385, %v389
    %v391 = vtanh.pop %v390
    %392 = vrot.lane.b32.xlu0 %v380, 32
    %v393 = vpop.permute.xlu0 %392
    %v395 = vmul.f32 %v391, %v393
    %396 = vset.pattern.permute.xlu0 3
    %397 = vperm.xlu0 %396, %v63
    %v398 = vpop.permute.xlu0 %397
    %v400 = vmul.f32 %v398, %v73
    %v401 = vadd.f32 %v400, %v80
    %v403 = vsel %vm94, %v395, 0
    %405 = vmatprep.subr.mxu0 0.0
    %406 = vmatpush1.msra.mxu0 %v64
    %407 = vmatprep.subr.mxu0 0.0
    %408 = vmatpush1.msra.mxu0 %v65
    %409 = vmatprep.subr.mxu0 0.0
    %410 = vmatpush1.msra.mxu0 %v66
    %411 = vmatprep.subr.mxu0 0.0
    %412 = vmatpush1.msra.mxu0 %v67
    %413 = vmatprep.subr.mxu0 0.0
    %414 = vmatpush1.msra.mxu0 0.0
    %415 = vmatprep.subr.mxu0 0.0
    %416 = vmatpush1.msra.mxu0 0.0
    %417 = vmatprep.subr.mxu0 0.0
    %418 = vmatpush1.msra.mxu0 0.0
    %419 = vmatprep.subr.mxu0 0.0
    %420 = vmatpush1.msra.mxu0 0.0
    %421 = vmatprep.subr.mxu0 0.0
    %422 = vmatpush1.msra.mxu0 0.0
    %423 = vmatprep.subr.mxu0 0.0
    %424 = vmatpush1.msra.mxu0 0.0
    %425 = vmatprep.subr.mxu0 0.0
    %426 = vmatpush1.msra.mxu0 0.0
    %427 = vmatprep.subr.mxu0 0.0
    %428 = vmatpush1.msra.mxu0 0.0
    %429 = vmatprep.subr.mxu0 0.0
    %430 = vmatpush1.msra.mxu0 0.0
    %431 = vmatprep.subr.mxu0 0.0
    %432 = vmatpush1.msra.mxu0 0.0
    %433 = vmatprep.subr.mxu0 0.0
    %434 = vmatpush1.msra.mxu0 0.0
    %435 = vmatprep.subr.mxu0 0.0
    %436 = vmatpush1.msra.mxu0 0.0
    %437 = vmatprep.subr.mxu0 0.0
    %438 = vmatpush1.msra.mxu0 0.0
    %439 = vmatprep.subr.mxu0 0.0
    %440 = vmatpush1.msra.mxu0 0.0
    %441 = vmatprep.subr.mxu0 0.0
    %442 = vmatpush1.msra.mxu0 0.0
    %443 = vmatprep.subr.mxu0 0.0
    %444 = vmatpush1.msra.mxu0 0.0
    %445 = vmatprep.subr.mxu0 0.0
    %446 = vmatpush1.msra.mxu0 0.0
    %447 = vmatprep.subr.mxu0 0.0
    %448 = vmatpush1.msra.mxu0 0.0
    %449 = vmatprep.subr.mxu0 0.0
    %450 = vmatpush1.msra.mxu0 0.0
    %451 = vmatprep.subr.mxu0 0.0
    %452 = vmatpush1.msra.mxu0 0.0
    %453 = vmatprep.subr.mxu0 0.0
    %454 = vmatpush1.msra.mxu0 0.0
    %455 = vmatprep.subr.mxu0 0.0
    %456 = vmatpush1.msra.mxu0 0.0
    %457 = vmatprep.subr.mxu0 0.0
    %458 = vmatpush1.msra.mxu0 0.0
    %459 = vmatprep.subr.mxu0 0.0
    %460 = vmatpush1.msra.mxu0 0.0
    %461 = vmatprep.subr.mxu0 0.0
    %462 = vmatpush1.msra.mxu0 0.0
    %463 = vmatprep.subr.mxu0 0.0
    %464 = vmatpush1.msra.mxu0 0.0
    %465 = vmatprep.subr.mxu0 0.0
    %466 = vmatpush1.msra.mxu0 0.0
    %467 = vmatprep.subr.mxu0 0.0
    %468 = vmatpush1.msra.mxu0 0.0
    %469 = vmatprep.mubr.f32.mxu0 0.0
    %470 = vmatmul.mubr.f32.gmra.mrb[0].mxu0 %v403
    %v471 = vpop.f32.mrb[0].mxu0
    %v472 = vadd.f32 %v401, %v471
    %v473 = vpop.f32.mrb[0].mxu0
    %474 = vdwg.mxu0
    %v475 = vxor.u32 %v472, 2147483648
    %v476 = vmul.f32 %v475, 1.442695
    %v477 = vpow.pop %v476
    %v478 = vadd.f32 %v477, 1.0
    %v479 = vrcp.pop %v478
    %v480 = vmul.f32 1.0, %v479
    %v481 = vtanh.pop %v472
    %v482 = vsel %vm86, %v480, %v481
    %484 = vrot.lane.b32.xlu0 %v482, 96
    %v485 = vpop.permute.xlu0 %484
    %v487 = vmul.f32 %v482, %v485
    %488 = vrot.lane.b32.xlu0 %v482, 64
    %v489 = vpop.permute.xlu0 %488
    %v491 = vmul.f32 %v390, %v489
    %v492 = vadd.f32 %v487, %v491
    %v493 = vtanh.pop %v492
    %494 = vrot.lane.b32.xlu0 %v482, 32
    %v495 = vpop.permute.xlu0 %494
    %v497 = vmul.f32 %v493, %v495
    %498 = vset.pattern.permute.xlu0 4
    %499 = vperm.xlu0 %498, %v63
    %v500 = vpop.permute.xlu0 %499
    %v502 = vmul.f32 %v500, %v73
    %v503 = vadd.f32 %v502, %v80
    %v505 = vsel %vm94, %v497, 0
    %507 = vmatprep.subr.mxu0 0.0
    %508 = vmatpush1.msra.mxu0 %v64
    %509 = vmatprep.subr.mxu0 0.0
    %510 = vmatpush1.msra.mxu0 %v65
    %511 = vmatprep.subr.mxu0 0.0
    %512 = vmatpush1.msra.mxu0 %v66
    %513 = vmatprep.subr.mxu0 0.0
    %514 = vmatpush1.msra.mxu0 %v67
    %515 = vmatprep.subr.mxu0 0.0
    %516 = vmatpush1.msra.mxu0 0.0
    %517 = vmatprep.subr.mxu0 0.0
    %518 = vmatpush1.msra.mxu0 0.0
    %519 = vmatprep.subr.mxu0 0.0
    %520 = vmatpush1.msra.mxu0 0.0
    %521 = vmatprep.subr.mxu0 0.0
    %522 = vmatpush1.msra.mxu0 0.0
    %523 = vmatprep.subr.mxu0 0.0
    %524 = vmatpush1.msra.mxu0 0.0
    %525 = vmatprep.subr.mxu0 0.0
    %526 = vmatpush1.msra.mxu0 0.0
    %527 = vmatprep.subr.mxu0 0.0
    %528 = vmatpush1.msra.mxu0 0.0
    %529 = vmatprep.subr.mxu0 0.0
    %530 = vmatpush1.msra.mxu0 0.0
    %531 = vmatprep.subr.mxu0 0.0
    %532 = vmatpush1.msra.mxu0 0.0
    %533 = vmatprep.subr.mxu0 0.0
    %534 = vmatpush1.msra.mxu0 0.0
    %535 = vmatprep.subr.mxu0 0.0
    %536 = vmatpush1.msra.mxu0 0.0
    %537 = vmatprep.subr.mxu0 0.0
    %538 = vmatpush1.msra.mxu0 0.0
    %539 = vmatprep.subr.mxu0 0.0
    %540 = vmatpush1.msra.mxu0 0.0
    %541 = vmatprep.subr.mxu0 0.0
    %542 = vmatpush1.msra.mxu0 0.0
    %543 = vmatprep.subr.mxu0 0.0
    %544 = vmatpush1.msra.mxu0 0.0
    %545 = vmatprep.subr.mxu0 0.0
    %546 = vmatpush1.msra.mxu0 0.0
    %547 = vmatprep.subr.mxu0 0.0
    %548 = vmatpush1.msra.mxu0 0.0
    %549 = vmatprep.subr.mxu0 0.0
    %550 = vmatpush1.msra.mxu0 0.0
    %551 = vmatprep.subr.mxu0 0.0
    %552 = vmatpush1.msra.mxu0 0.0
    %553 = vmatprep.subr.mxu0 0.0
    %554 = vmatpush1.msra.mxu0 0.0
    %555 = vmatprep.subr.mxu0 0.0
    %556 = vmatpush1.msra.mxu0 0.0
    %557 = vmatprep.subr.mxu0 0.0
    %558 = vmatpush1.msra.mxu0 0.0
    %559 = vmatprep.subr.mxu0 0.0
    %560 = vmatpush1.msra.mxu0 0.0
    %561 = vmatprep.subr.mxu0 0.0
    %562 = vmatpush1.msra.mxu0 0.0
    %563 = vmatprep.subr.mxu0 0.0
    %564 = vmatpush1.msra.mxu0 0.0
    %565 = vmatprep.subr.mxu0 0.0
    %566 = vmatpush1.msra.mxu0 0.0
    %567 = vmatprep.subr.mxu0 0.0
    %568 = vmatpush1.msra.mxu0 0.0
    %569 = vmatprep.subr.mxu0 0.0
    %570 = vmatpush1.msra.mxu0 0.0
    %571 = vmatprep.mubr.f32.mxu0 0.0
    %572 = vmatmul.mubr.f32.gmra.mrb[0].mxu0 %v505
    %v573 = vpop.f32.mrb[0].mxu0
    %v574 = vadd.f32 %v503, %v573
    %v575 = vpop.f32.mrb[0].mxu0
    %576 = vdwg.mxu0
    %v577 = vxor.u32 %v574, 2147483648
    %v578 = vmul.f32 %v577, 1.442695
    %v579 = vpow.pop %v578
    %v580 = vadd.f32 %v579, 1.0
    %v581 = vrcp.pop %v580
    %v582 = vmul.f32 1.0, %v581
    %v583 = vtanh.pop %v574
    %v584 = vsel %vm86, %v582, %v583
    %586 = vrot.lane.b32.xlu0 %v584, 96
    %v587 = vpop.permute.xlu0 %586
    %v589 = vmul.f32 %v584, %v587
    %590 = vrot.lane.b32.xlu0 %v584, 64
    %v591 = vpop.permute.xlu0 %590
    %v593 = vmul.f32 %v492, %v591
    %v594 = vadd.f32 %v589, %v593
    %v595 = vtanh.pop %v594
    %596 = vrot.lane.b32.xlu0 %v584, 32
    %v597 = vpop.permute.xlu0 %596
    %v599 = vmul.f32 %v595, %v597
    %600 = vset.pattern.permute.xlu0 5
    %601 = vperm.xlu0 %600, %v63
    %v602 = vpop.permute.xlu0 %601
    %v604 = vmul.f32 %v602, %v73
    %v605 = vadd.f32 %v604, %v80
    %v607 = vsel %vm94, %v599, 0
    %609 = vmatprep.subr.mxu0 0.0
    %610 = vmatpush1.msra.mxu0 %v64
    %611 = vmatprep.subr.mxu0 0.0
    %612 = vmatpush1.msra.mxu0 %v65
    %613 = vmatprep.subr.mxu0 0.0
    %614 = vmatpush1.msra.mxu0 %v66
    %615 = vmatprep.subr.mxu0 0.0
    %616 = vmatpush1.msra.mxu0 %v67
    %617 = vmatprep.subr.mxu0 0.0
    %618 = vmatpush1.msra.mxu0 0.0
    %619 = vmatprep.subr.mxu0 0.0
    %620 = vmatpush1.msra.mxu0 0.0
    %621 = vmatprep.subr.mxu0 0.0
    %622 = vmatpush1.msra.mxu0 0.0
    %623 = vmatprep.subr.mxu0 0.0
    %624 = vmatpush1.msra.mxu0 0.0
    %625 = vmatprep.subr.mxu0 0.0
    %626 = vmatpush1.msra.mxu0 0.0
    %627 = vmatprep.subr.mxu0 0.0
    %628 = vmatpush1.msra.mxu0 0.0
    %629 = vmatprep.subr.mxu0 0.0
    %630 = vmatpush1.msra.mxu0 0.0
    %631 = vmatprep.subr.mxu0 0.0
    %632 = vmatpush1.msra.mxu0 0.0
    %633 = vmatprep.subr.mxu0 0.0
    %634 = vmatpush1.msra.mxu0 0.0
    %635 = vmatprep.subr.mxu0 0.0
    %636 = vmatpush1.msra.mxu0 0.0
    %637 = vmatprep.subr.mxu0 0.0
    %638 = vmatpush1.msra.mxu0 0.0
    %639 = vmatprep.subr.mxu0 0.0
    %640 = vmatpush1.msra.mxu0 0.0
    %641 = vmatprep.subr.mxu0 0.0
    %642 = vmatpush1.msra.mxu0 0.0
    %643 = vmatprep.subr.mxu0 0.0
    %644 = vmatpush1.msra.mxu0 0.0
    %645 = vmatprep.subr.mxu0 0.0
    %646 = vmatpush1.msra.mxu0 0.0
    %647 = vmatprep.subr.mxu0 0.0
    %648 = vmatpush1.msra.mxu0 0.0
    %649 = vmatprep.subr.mxu0 0.0
    %650 = vmatpush1.msra.mxu0 0.0
    %651 = vmatprep.subr.mxu0 0.0
    %652 = vmatpush1.msra.mxu0 0.0
    %653 = vmatprep.subr.mxu0 0.0
    %654 = vmatpush1.msra.mxu0 0.0
    %655 = vmatprep.subr.mxu0 0.0
    %656 = vmatpush1.msra.mxu0 0.0
    %657 = vmatprep.subr.mxu0 0.0
    %658 = vmatpush1.msra.mxu0 0.0
    %659 = vmatprep.subr.mxu0 0.0
    %660 = vmatpush1.msra.mxu0 0.0
    %661 = vmatprep.subr.mxu0 0.0
    %662 = vmatpush1.msra.mxu0 0.0
    %663 = vmatprep.subr.mxu0 0.0
    %664 = vmatpush1.msra.mxu0 0.0
    %665 = vmatprep.subr.mxu0 0.0
    %666 = vmatpush1.msra.mxu0 0.0
    %667 = vmatprep.subr.mxu0 0.0
    %668 = vmatpush1.msra.mxu0 0.0
    %669 = vmatprep.subr.mxu0 0.0
    %670 = vmatpush1.msra.mxu0 0.0
    %671 = vmatprep.subr.mxu0 0.0
    %672 = vmatpush1.msra.mxu0 0.0
    %673 = vmatprep.mubr.f32.mxu0 0.0
    %674 = vmatmul.mubr.f32.gmra.mrb[0].mxu0 %v607
    %v675 = vpop.f32.mrb[0].mxu0
    %v676 = vadd.f32 %v605, %v675
    %v677 = vpop.f32.mrb[0].mxu0
    %678 = vdwg.mxu0
    %v679 = vxor.u32 %v676, 2147483648
    %v680 = vmul.f32 %v679, 1.442695
    %v681 = vpow.pop %v680
    %v682 = vadd.f32 %v681, 1.0
    %v683 = vrcp.pop %v682
    %v684 = vmul.f32 1.0, %v683
    %v685 = vtanh.pop %v676
    %v686 = vsel %vm86, %v684, %v685
    %688 = vrot.lane.b32.xlu0 %v686, 96
    %v689 = vpop.permute.xlu0 %688
    %v691 = vmul.f32 %v686, %v689
    %692 = vrot.lane.b32.xlu0 %v686, 64
    %v693 = vpop.permute.xlu0 %692
    %v695 = vmul.f32 %v594, %v693
    %v696 = vadd.f32 %v691, %v695
    %v697 = vtanh.pop %v696
    %698 = vrot.lane.b32.xlu0 %v686, 32
    %v699 = vpop.permute.xlu0 %698
    %v701 = vmul.f32 %v697, %v699
    %702 = vset.pattern.permute.xlu0 6
    %703 = vperm.xlu0 %702, %v63
    %v704 = vpop.permute.xlu0 %703
    %v706 = vmul.f32 %v704, %v73
    %v707 = vadd.f32 %v706, %v80
    %v709 = vsel %vm94, %v701, 0
    %711 = vmatprep.subr.mxu0 0.0
    %712 = vmatpush1.msra.mxu0 %v64
    %713 = vmatprep.subr.mxu0 0.0
    %714 = vmatpush1.msra.mxu0 %v65
    %715 = vmatprep.subr.mxu0 0.0
    %716 = vmatpush1.msra.mxu0 %v66
    %717 = vmatprep.subr.mxu0 0.0
    %718 = vmatpush1.msra.mxu0 %v67
    %719 = vmatprep.subr.mxu0 0.0
    %720 = vmatpush1.msra.mxu0 0.0
    %721 = vmatprep.subr.mxu0 0.0
    %722 = vmatpush1.msra.mxu0 0.0
    %723 = vmatprep.subr.mxu0 0.0
    %724 = vmatpush1.msra.mxu0 0.0
    %725 = vmatprep.subr.mxu0 0.0
    %726 = vmatpush1.msra.mxu0 0.0
    %727 = vmatprep.subr.mxu0 0.0
    %728 = vmatpush1.msra.mxu0 0.0
    %729 = vmatprep.subr.mxu0 0.0
    %730 = vmatpush1.msra.mxu0 0.0
    %731 = vmatprep.subr.mxu0 0.0
    %732 = vmatpush1.msra.mxu0 0.0
    %733 = vmatprep.subr.mxu0 0.0
    %734 = vmatpush1.msra.mxu0 0.0
    %735 = vmatprep.subr.mxu0 0.0
    %736 = vmatpush1.msra.mxu0 0.0
    %737 = vmatprep.subr.mxu0 0.0
    %738 = vmatpush1.msra.mxu0 0.0
    %739 = vmatprep.subr.mxu0 0.0
    %740 = vmatpush1.msra.mxu0 0.0
    %741 = vmatprep.subr.mxu0 0.0
    %742 = vmatpush1.msra.mxu0 0.0
    %743 = vmatprep.subr.mxu0 0.0
    %744 = vmatpush1.msra.mxu0 0.0
    %745 = vmatprep.subr.mxu0 0.0
    %746 = vmatpush1.msra.mxu0 0.0
    %747 = vmatprep.subr.mxu0 0.0
    %748 = vmatpush1.msra.mxu0 0.0
    %749 = vmatprep.subr.mxu0 0.0
    %750 = vmatpush1.msra.mxu0 0.0
    %751 = vmatprep.subr.mxu0 0.0
    %752 = vmatpush1.msra.mxu0 0.0
    %753 = vmatprep.subr.mxu0 0.0
    %754 = vmatpush1.msra.mxu0 0.0
    %755 = vmatprep.subr.mxu0 0.0
    %756 = vmatpush1.msra.mxu0 0.0
    %757 = vmatprep.subr.mxu0 0.0
    %758 = vmatpush1.msra.mxu0 0.0
    %759 = vmatprep.subr.mxu0 0.0
    %760 = vmatpush1.msra.mxu0 0.0
    %761 = vmatprep.subr.mxu0 0.0
    %762 = vmatpush1.msra.mxu0 0.0
    %763 = vmatprep.subr.mxu0 0.0
    %764 = vmatpush1.msra.mxu0 0.0
    %765 = vmatprep.subr.mxu0 0.0
    %766 = vmatpush1.msra.mxu0 0.0
    %767 = vmatprep.subr.mxu0 0.0
    %768 = vmatpush1.msra.mxu0 0.0
    %769 = vmatprep.subr.mxu0 0.0
    %770 = vmatpush1.msra.mxu0 0.0
    %771 = vmatprep.subr.mxu0 0.0
    %772 = vmatpush1.msra.mxu0 0.0
    %773 = vmatprep.subr.mxu0 0.0
    %774 = vmatpush1.msra.mxu0 0.0
    %775 = vmatprep.mubr.f32.mxu0 0.0
    %776 = vmatmul.mubr.f32.gmra.mrb[0].mxu0 %v709
    %v777 = vpop.f32.mrb[0].mxu0
    %v778 = vadd.f32 %v707, %v777
    %v779 = vpop.f32.mrb[0].mxu0
    %780 = vdwg.mxu0
    %v781 = vxor.u32 %v778, 2147483648
    %v782 = vmul.f32 %v781, 1.442695
    %v783 = vpow.pop %v782
    %v784 = vadd.f32 %v783, 1.0
    %v785 = vrcp.pop %v784
    %v786 = vmul.f32 1.0, %v785
    %v787 = vtanh.pop %v778
    %v788 = vsel %vm86, %v786, %v787
    %790 = vrot.lane.b32.xlu0 %v788, 96
    %v791 = vpop.permute.xlu0 %790
    %v793 = vmul.f32 %v788, %v791
    %794 = vrot.lane.b32.xlu0 %v788, 64
    %v795 = vpop.permute.xlu0 %794
    %v797 = vmul.f32 %v696, %v795
    %v798 = vadd.f32 %v793, %v797
    %v799 = vtanh.pop %v798
    %800 = vrot.lane.b32.xlu0 %v788, 32
    %v801 = vpop.permute.xlu0 %800
    %v803 = vmul.f32 %v799, %v801
    %804 = vset.pattern.permute.xlu0 7
    %805 = vperm.xlu0 %804, %v63
    %v806 = vpop.permute.xlu0 %805
    %v808 = vmul.f32 %v806, %v73
    %v809 = vadd.f32 %v808, %v80
    %v811 = vsel %vm94, %v803, 0
    %813 = vmatprep.subr.mxu0 0.0
    %814 = vmatpush1.msra.mxu0 %v64
    %815 = vmatprep.subr.mxu0 0.0
    %816 = vmatpush1.msra.mxu0 %v65
    %817 = vmatprep.subr.mxu0 0.0
    %818 = vmatpush1.msra.mxu0 %v66
    %819 = vmatprep.subr.mxu0 0.0
    %820 = vmatpush1.msra.mxu0 %v67
    %821 = vmatprep.subr.mxu0 0.0
    %822 = vmatpush1.msra.mxu0 0.0
    %823 = vmatprep.subr.mxu0 0.0
    %824 = vmatpush1.msra.mxu0 0.0
    %825 = vmatprep.subr.mxu0 0.0
    %826 = vmatpush1.msra.mxu0 0.0
    %827 = vmatprep.subr.mxu0 0.0
    %828 = vmatpush1.msra.mxu0 0.0
    %829 = vmatprep.subr.mxu0 0.0
    %830 = vmatpush1.msra.mxu0 0.0
    %831 = vmatprep.subr.mxu0 0.0
    %832 = vmatpush1.msra.mxu0 0.0
    %833 = vmatprep.subr.mxu0 0.0
    %834 = vmatpush1.msra.mxu0 0.0
    %835 = vmatprep.subr.mxu0 0.0
    %836 = vmatpush1.msra.mxu0 0.0
    %837 = vmatprep.subr.mxu0 0.0
    %838 = vmatpush1.msra.mxu0 0.0
    %839 = vmatprep.subr.mxu0 0.0
    %840 = vmatpush1.msra.mxu0 0.0
    %841 = vmatprep.subr.mxu0 0.0
    %842 = vmatpush1.msra.mxu0 0.0
    %843 = vmatprep.subr.mxu0 0.0
    %844 = vmatpush1.msra.mxu0 0.0
    %845 = vmatprep.subr.mxu0 0.0
    %846 = vmatpush1.msra.mxu0 0.0
    %847 = vmatprep.subr.mxu0 0.0
    %848 = vmatpush1.msra.mxu0 0.0
    %849 = vmatprep.subr.mxu0 0.0
    %850 = vmatpush1.msra.mxu0 0.0
    %851 = vmatprep.subr.mxu0 0.0
    %852 = vmatpush1.msra.mxu0 0.0
    %853 = vmatprep.subr.mxu0 0.0
    %854 = vmatpush1.msra.mxu0 0.0
    %855 = vmatprep.subr.mxu0 0.0
    %856 = vmatpush1.msra.mxu0 0.0
    %857 = vmatprep.subr.mxu0 0.0
    %858 = vmatpush1.msra.mxu0 0.0
    %859 = vmatprep.subr.mxu0 0.0
    %860 = vmatpush1.msra.mxu0 0.0
    %861 = vmatprep.subr.mxu0 0.0
    %862 = vmatpush1.msra.mxu0 0.0
    %863 = vmatprep.subr.mxu0 0.0
    %864 = vmatpush1.msra.mxu0 0.0
    %865 = vmatprep.subr.mxu0 0.0
    %866 = vmatpush1.msra.mxu0 0.0
    %867 = vmatprep.subr.mxu0 0.0
    %868 = vmatpush1.msra.mxu0 0.0
    %869 = vmatprep.subr.mxu0 0.0
    %870 = vmatpush1.msra.mxu0 0.0
    %871 = vmatprep.subr.mxu0 0.0
    %872 = vmatpush1.msra.mxu0 0.0
    %873 = vmatprep.subr.mxu0 0.0
    %874 = vmatpush1.msra.mxu0 0.0
    %875 = vmatprep.subr.mxu0 0.0
    %876 = vmatpush1.msra.mxu0 0.0
    %877 = vmatprep.mubr.f32.mxu0 0.0
    %878 = vmatmul.mubr.f32.gmra.mrb[0].mxu0 %v811
    %v879 = vpop.f32.mrb[0].mxu0
    %v880 = vadd.f32 %v809, %v879
    %v881 = vpop.f32.mrb[0].mxu0
    %882 = vdwg.mxu0
    %v883 = vxor.u32 %v880, 2147483648
    %v884 = vmul.f32 %v883, 1.442695
    %v885 = vpow.pop %v884
    %v886 = vadd.f32 %v885, 1.0
    %v887 = vrcp.pop %v886
    %v888 = vmul.f32 1.0, %v887
    %v889 = vtanh.pop %v880
    %v890 = vsel %vm86, %v888, %v889
    %892 = vrot.lane.b32.xlu0 %v890, 96
    %v893 = vpop.permute.xlu0 %892
    %v895 = vmul.f32 %v890, %v893
    %896 = vrot.lane.b32.xlu0 %v890, 64
    %v897 = vpop.permute.xlu0 %896
    %v899 = vmul.f32 %v798, %v897
    %v900 = vadd.f32 %v895, %v899
    %v901 = vtanh.pop %v900
    %902 = vrot.lane.b32.xlu0 %v890, 32
    %v903 = vpop.permute.xlu0 %902
    %v905 = vmul.f32 %v901, %v903
    %v906 = vld [vmem:[#allocation7] sm:$0xff]
    %v907 = vld [vmem:[#allocation7 + $0x8] sm:$0xff]
    %v908 = vld [vmem:[#allocation7 + $0x10] sm:$0xff]
    %v909 = vld [vmem:[#allocation7 + $0x18] sm:$0xff]
    %v910 = vld [vmem:[%s5] sm:$0x1]
    %v912 = vlaneseq
    %v913 = vshrl.u32 %v912, 7
    %v914 = vsub.s32 0, %v913
    %v915 = vrot.slane %v910, %v914
    %v918 = vsel %vm94, %v905, 0
    %920 = vmatprep.subr.mxu0 0.0
    %921 = vmatpush1.msra.mxu0 %v906
    %922 = vmatprep.subr.mxu0 0.0
    %923 = vmatpush1.msra.mxu0 %v907
    %924 = vmatprep.subr.mxu0 0.0
    %925 = vmatpush1.msra.mxu0 %v908
    %926 = vmatprep.subr.mxu0 0.0
    %927 = vmatpush1.msra.mxu0 %v909
    %928 = vmatprep.subr.mxu0 0.0
    %929 = vmatpush1.msra.mxu0 0.0
    %930 = vmatprep.subr.mxu0 0.0
    %931 = vmatpush1.msra.mxu0 0.0
    %932 = vmatprep.subr.mxu0 0.0
    %933 = vmatpush1.msra.mxu0 0.0
    %934 = vmatprep.subr.mxu0 0.0
    %935 = vmatpush1.msra.mxu0 0.0
    %936 = vmatprep.subr.mxu0 0.0
    %937 = vmatpush1.msra.mxu0 0.0
    %938 = vmatprep.subr.mxu0 0.0
    %939 = vmatpush1.msra.mxu0 0.0
    %940 = vmatprep.subr.mxu0 0.0
    %941 = vmatpush1.msra.mxu0 0.0
    %942 = vmatprep.subr.mxu0 0.0
    %943 = vmatpush1.msra.mxu0 0.0
    %944 = vmatprep.subr.mxu0 0.0
    %945 = vmatpush1.msra.mxu0 0.0
    %946 = vmatprep.subr.mxu0 0.0
    %947 = vmatpush1.msra.mxu0 0.0
    %948 = vmatprep.subr.mxu0 0.0
    %949 = vmatpush1.msra.mxu0 0.0
    %950 = vmatprep.subr.mxu0 0.0
    %951 = vmatpush1.msra.mxu0 0.0
    %952 = vmatprep.subr.mxu0 0.0
    %953 = vmatpush1.msra.mxu0 0.0
    %954 = vmatprep.subr.mxu0 0.0
    %955 = vmatpush1.msra.mxu0 0.0
    %956 = vmatprep.subr.mxu0 0.0
    %957 = vmatpush1.msra.mxu0 0.0
    %958 = vmatprep.subr.mxu0 0.0
    %959 = vmatpush1.msra.mxu0 0.0
    %960 = vmatprep.subr.mxu0 0.0
    %961 = vmatpush1.msra.mxu0 0.0
    %962 = vmatprep.subr.mxu0 0.0
    %963 = vmatpush1.msra.mxu0 0.0
    %964 = vmatprep.subr.mxu0 0.0
    %965 = vmatpush1.msra.mxu0 0.0
    %966 = vmatprep.subr.mxu0 0.0
    %967 = vmatpush1.msra.mxu0 0.0
    %968 = vmatprep.subr.mxu0 0.0
    %969 = vmatpush1.msra.mxu0 0.0
    %970 = vmatprep.subr.mxu0 0.0
    %971 = vmatpush1.msra.mxu0 0.0
    %972 = vmatprep.subr.mxu0 0.0
    %973 = vmatpush1.msra.mxu0 0.0
    %974 = vmatprep.subr.mxu0 0.0
    %975 = vmatpush1.msra.mxu0 0.0
    %976 = vmatprep.subr.mxu0 0.0
    %977 = vmatpush1.msra.mxu0 0.0
    %978 = vmatprep.subr.mxu0 0.0
    %979 = vmatpush1.msra.mxu0 0.0
    %980 = vmatprep.subr.mxu0 0.0
    %981 = vmatpush1.msra.mxu0 0.0
    %982 = vmatprep.subr.mxu0 0.0
    %983 = vmatpush1.msra.mxu0 0.0
    %984 = vmatprep.mubr.f32.mxu0 0.0
    %985 = vmatmul.mubr.f32.gmra.mrb[0].mxu0 %v918
    %v986 = vpop.f32.mrb[0].mxu0
    %v987 = vadd.f32 %v915, %v986
    %v988 = vpop.f32.mrb[0].mxu0
    %989 = vdwg.mxu0
    %990 = vst [vmem:[#allocation8] sm:$0xff] %v987
    // Predicated region
    $region38: #{tpu_custom_call.1} parent=1 // pred_check
      _
    $region39: #{tpu_custom_call.1} parent=1 // pred_check_branch
      %992 = sbr.rel (0) target = $region41
    $region40: #{tpu_custom_call.1} parent=1 // pred_region
      %s994 = ssub.s32 128, 128
      %995 = vsyncadd [#allocation4], %s994
      %s997 = sshll.u32 [#allocation8], 4
      %s998 = int_to_ptr.vmem [resolvable:$true] %s997
      %1000 = dma.vmem_to_hbm [thread:$0]  %s998, 128, %s6, [#allocation4]
    $region41: #{tpu_custom_call.1} parent=1 // pred_fallthru
      _
    // Predicated region
    $region42: #{tpu_custom_call.1} parent=1 // pred_check
      _
    $region43: #{tpu_custom_call.1} parent=1 // pred_check_branch
      %1002 = sbr.rel (0) target = $region45
    $region44: #{tpu_custom_call.1} parent=1 // pred_region
      %1003 = dma.done [#allocation4], 128
    $region45: #{tpu_custom_call.1} parent=1 // pred_fallthru
      _
    %1004 = vsyncpa [#allocation3], 1
    %1005 = vsyncpa [#allocation6], 1
    %1006 = vsyncpa [#allocation4], 1

</llo_original>
